<compile_context>
chip_gen: v7x
topology: tpu7x:2x2x1
jax: 0.10.0
libtpu: 0.0.40
codegen_flags: <defaults>
</compile_context>

<pallas_src>
import functools
import math

import jax
import jax.numpy as jnp
from jax import lax
from jax.experimental import pallas as pl
from jax.experimental.pallas import tpu as pltpu


# ---------------------------------------------------------------------------
# Kernel 1: fused per-(batch, head) self-attention
#   one grid step = Q/K/V projection for one head + masked softmax + probs @ V
# ---------------------------------------------------------------------------
def _self_attention_kernel(h_ref, m_ref, wq_ref, bq_ref, wk_ref, bk_ref,
                           wv_ref, bv_ref, o_ref, *, scale):
    # h_ref : (1, S, H)     hidden_states for this batch
    # m_ref : (1, S, S)     additive attention mask for this batch
    # w*_ref: (1, H, hd)    per-head projection weight (x @ w layout)
    # b*_ref: (1, 1, hd)    per-head projection bias
    # o_ref : (1, 1, S, hd) per-(batch, head) context output
    x = h_ref[0]                                              # (S, H)

    # Native-dtype operands into the MXU, f32 accumulation.
    q = jnp.dot(x, wq_ref[0], preferred_element_type=jnp.float32)
    q = q + bq_ref[0].astype(jnp.float32)                     # (S, hd)
    k = jnp.dot(x, wk_ref[0], preferred_element_type=jnp.float32)
    k = k + bk_ref[0].astype(jnp.float32)                     # (S, hd)
    v = jnp.dot(x, wv_ref[0], preferred_element_type=jnp.float32)
    v = v + bv_ref[0].astype(jnp.float32)                     # (S, hd)

    # scores = (q @ k^T) * scale + mask  (contract over hd, no explicit .T)
    s = lax.dot_general(q, k, (((1,), (1,)), ((), ())),
                        preferred_element_type=jnp.float32)   # (S, S)
    s = s * scale + m_ref[0].astype(jnp.float32)

    # numerically stable softmax over keys
    m = jnp.max(s, axis=-1, keepdims=True)
    p = jnp.exp(s - m)
    p = p / jnp.sum(p, axis=-1, keepdims=True)
    # TODO(synk): attention dropout omitted (eval-mode identity; train mode
    # would need pltpu.prng_seed / pltpu.prng_random_bits).

    ctx = jnp.dot(p.astype(v.dtype), v, preferred_element_type=jnp.float32)
    o_ref[0, 0] = ctx.astype(o_ref.dtype)                     # (S, hd)


def self_attention_forward(hidden_states, attention_mask,
                           wq, bq, wk, bk, wv, bv, *, num_heads):
    """hidden_states (B,S,H), attention_mask (B,S,S) -> context (B,S,H)."""
    B, S, H = hidden_states.shape
    hd = H // num_heads
    scale = 1.0 / math.sqrt(hd)

    # Per-head weight/bias views (done once in the wrapper):
    #   (H, H) -> (nh, H, hd),  (H,) -> (nh, 1, hd)
    def per_head_w(w):
        return w.reshape(H, num_heads, hd).transpose(1, 0, 2)

    def per_head_b(b):
        return b.reshape(num_heads, 1, hd)

    wq_h, wk_h, wv_h = per_head_w(wq), per_head_w(wk), per_head_w(wv)
    bq_h, bk_h, bv_h = per_head_b(bq), per_head_b(bk), per_head_b(bv)

    cost = pl.CostEstimate(
        flops=int(B * num_heads * (3 * 2 * S * H * hd          # q/k/v proj
                                   + 2 * 2 * S * S * hd        # scores + p@v
                                   + 6 * S * S)),              # softmax elems
        transcendentals=int(B * num_heads * S * S),
        bytes_accessed=int(4 * (B * S * H + B * S * S + 3 * H * H + 3 * H
                                + B * num_heads * S * hd)))

    def w_spec():
        return pl.BlockSpec((1, H, hd), lambda b, h: (h, 0, 0))

    def b_spec():
        return pl.BlockSpec((1, 1, hd), lambda b, h: (h, 0, 0))

    # TODO(synk): long-sequence configs would add a third ("arbitrary") grid
    # axis tiling K/V flash-style; the test sequence fits in one block.
    ctx = pl.pallas_call(
        functools.partial(_self_attention_kernel, scale=scale),
        out_shape=jax.ShapeDtypeStruct((B, num_heads, S, hd),
                                       hidden_states.dtype),
        grid_spec=pltpu.PrefetchScalarGridSpec(
            num_scalar_prefetch=0,
            grid=(B, num_heads),
            in_specs=[
                pl.BlockSpec((1, S, H), lambda b, h: (b, 0, 0)),   # hidden
                pl.BlockSpec((1, S, S), lambda b, h: (b, 0, 0)),   # mask
                w_spec(), b_spec(),                                 # Wq, bq
                w_spec(), b_spec(),                                 # Wk, bk
                w_spec(), b_spec(),                                 # Wv, bv
            ],
            out_specs=pl.BlockSpec((1, 1, S, hd),
                                   lambda b, h: (b, h, 0, 0)),
        ),
        compiler_params=pltpu.CompilerParams(
            dimension_semantics=("parallel", "parallel"),
            vmem_limit_bytes=64 * 1024 * 1024),
        cost_estimate=cost,
    )(hidden_states, attention_mask, wq_h, bq_h, wk_h, bk_h, wv_h, bv_h)

    # (B, nh, S, hd) -> (B, S, H)   (wrapper-level relayout)
    return ctx.transpose(0, 2, 1, 3).reshape(B, S, H)


# ---------------------------------------------------------------------------
# Kernel 2: fused SelfOutput = Linear + residual + LayerNorm
# ---------------------------------------------------------------------------
def _self_output_kernel(x_ref, res_ref, w_ref, b_ref, g_ref, beta_ref, o_ref,
                        *, eps):
    # x_ref    : (TS, H)    dense-input rows (context[0] rows, batch-shared)
    # res_ref  : (1, TS, H) residual (original hidden_states) rows
    # w_ref    : (H, H)     output dense weight (x @ w layout)
    # b_ref, g_ref, beta_ref : (1, H)
    # o_ref    : (1, TS, H)
    h = jnp.dot(x_ref[...], w_ref[...], preferred_element_type=jnp.float32)
    h = h + b_ref[...].astype(jnp.float32)
    # TODO(synk): hidden dropout omitted (eval-mode identity).
    h = h + res_ref[0].astype(jnp.float32)

    # single-pass mean / variance (one reduction pair instead of two passes)
    inv_h = 1.0 / h.shape[-1]
    s1 = jnp.sum(h, axis=-1, keepdims=True)
    s2 = jnp.sum(h * h, axis=-1, keepdims=True)
    mean = s1 * inv_h
    var = s2 * inv_h - mean * mean
    y = (h - mean) * lax.rsqrt(var + eps)
    y = y * g_ref[...].astype(jnp.float32) + beta_ref[...].astype(jnp.float32)
    o_ref[0] = y.astype(o_ref.dtype)


def self_output_forward(dense_in, residual, w, b, gamma, beta, *,
                        eps=1e-12, row_tile=256):
    """dense_in (S, H) [shared across batch], residual (B, S, H) -> (B, S, H)."""
    S, H = dense_in.shape
    B = residual.shape[0]

    # Large row tiles amortize the ~0.35us per-grid-step overhead and fill the
    # MXU M-dimension; fall back to full-S blocks when row_tile doesn't divide S.
    ts = min(row_tile, S)
    if S % ts != 0:
        ts = S
    grid = (B, S // ts)

    cost = pl.CostEstimate(
        flops=int(B * S * (2 * H * H + 10 * H)),
        transcendentals=int(B * S),                      # rsqrt
        bytes_accessed=int(4 * (S * H + 2 * B * S * H + H * H + 3 * H)))

    out = pl.pallas_call(
        functools.partial(_self_output_kernel, eps=eps),
        out_shape=jax.ShapeDtypeStruct((B, S, H), residual.dtype),
        grid_spec=pltpu.PrefetchScalarGridSpec(
            num_scalar_prefetch=0,
            grid=grid,
            in_specs=[
                # block index ignores the batch coordinate -> zero-copy
                # broadcast of context[0] across the batch (literal
                # `self_outputs[0]` semantics of the PyTorch module).
                pl.BlockSpec((ts, H), lambda bi, si: (si, 0)),         # dense in
                pl.BlockSpec((1, ts, H), lambda bi, si: (bi, si, 0)),  # residual
                pl.BlockSpec((H, H), lambda bi, si: (0, 0)),           # Wo
                pl.BlockSpec((1, H), lambda bi, si: (0, 0)),           # bo
                pl.BlockSpec((1, H), lambda bi, si: (0, 0)),           # gamma
                pl.BlockSpec((1, H), lambda bi, si: (0, 0)),           # beta
            ],
            out_specs=pl.BlockSpec((1, ts, H), lambda bi, si: (bi, si, 0)),
        ),
        compiler_params=pltpu.CompilerParams(
            dimension_semantics=("parallel", "parallel"),
            vmem_limit_bytes=64 * 1024 * 1024),
        cost_estimate=cost,
    )(dense_in, residual, w, b.reshape(1, H), gamma.reshape(1, H),
      beta.reshape(1, H))
    return out


# ---------------------------------------------------------------------------
# Full Attention forward (SelfAttention -> SelfOutput)
# ---------------------------------------------------------------------------
def attention_forward(hidden_states, attention_mask, wq, bq, wk, bk, wv, bv,
                      wo, bo, gamma, beta, *, num_heads, eps=1e-12,
                      row_tile=256):
    ctx = self_attention_forward(hidden_states, attention_mask,
                                 wq, bq, wk, bk, wv, bv, num_heads=num_heads)
    # Literal replication of `self.output(self_outputs[0], hidden_states)`:
    # SelfAttention returns a Tensor, so `[0]` selects batch 0 of the context.
    ctx0 = ctx[0]
    return self_output_forward(ctx0, hidden_states, wo, bo, gamma, beta,
                               eps=eps, row_tile=row_tile)


# ---------------------------------------------------------------------------
# Pure-JAX reference (mirrors the PyTorch module's literal forward)
# ---------------------------------------------------------------------------
def _reference(hidden, mask, wq, bq, wk, bk, wv, bv, wo, bo, gamma, beta,
               *, num_heads, eps):
    B, S, H = hidden.shape
    hd = H // num_heads

    def split(x):
        return x.reshape(B, S, num_heads, hd).transpose(0, 2, 1, 3)

    q = split(hidden @ wq + bq)
    k = split(hidden @ wk + bk)
    v = split(hidden @ wv + bv)
    s = jnp.einsum("bhqd,bhkd->bhqk", q, k) / math.sqrt(hd)
    s = s + mask[:, None, :, :]
    p = jax.nn.softmax(s, axis=-1)
    ctx = jnp.einsum("bhqk,bhkd->bhqd", p, v)
    ctx = ctx.transpose(0, 2, 1, 3).reshape(B, S, H)

    x0 = ctx[0]                       # literal `self_outputs[0]` on a Tensor
    h = x0 @ wo + bo                  # (S, H)
    h = h + hidden                    # broadcasts to (B, S, H)
    mean = jnp.mean(h, axis=-1, keepdims=True)
    var = jnp.mean((h - mean) ** 2, axis=-1, keepdims=True)
    return (h - mean) * lax.rsqrt(var + eps) * gamma + beta


if __name__ == "__main__":
    # Small GraphTransConfig-like shapes: hidden_size=32, attention_heads=4
    B, S, H, NH = 2, 8, 32, 4
    eps = 1e-12

    key = jax.random.PRNGKey(0)
    ks = jax.random.split(key, 10)

    hidden = jax.random.normal(ks[0], (B, S, H), dtype=jnp.float32)

    # Additive attention mask (B, S, S): 0 = attend, -1e9 = masked (diag kept).
    keep = jax.random.uniform(ks[1], (B, S, S)) > 0.15
    keep = keep | jnp.eye(S, dtype=bool)[None]
    mask = jnp.where(keep, 0.0, -1e9).astype(jnp.float32)

    # Parameters. Weights stored in (in, out) layout and used as x @ W
    # (equivalent to PyTorch's x @ weight.T with weight = W.T).
    bound = 1.0 / math.sqrt(H)

    def init_w(k):
        return jax.random.uniform(k, (H, H), minval=-bound, maxval=bound,
                                  dtype=jnp.float32)

    def init_b(k):
        return jax.random.uniform(k, (H,), minval=-bound, maxval=bound,
                                  dtype=jnp.float32)

    wq, wk, wv, wo = init_w(ks[2]), init_w(ks[3]), init_w(ks[4]), init_w(ks[5])
    bq, bk, bv, bo = init_b(ks[6]), init_b(ks[7]), init_b(ks[8]), init_b(ks[9])
    gamma = jnp.ones((H,), jnp.float32)
    beta = jnp.zeros((H,), jnp.float32)

    out = attention_forward(hidden, mask, wq, bq, wk, bk, wv, bv,
                            wo, bo, gamma, beta, num_heads=NH, eps=eps)
    out = jax.block_until_ready(out)

    ref = _reference(hidden, mask, wq, bq, wk, bk, wv, bv, wo, bo,
                     gamma, beta, num_heads=NH, eps=eps)

    assert out.shape == (B, S, H)
    assert jnp.allclose(out, ref, atol=1e-4, rtol=1e-4), "mismatch vs reference"

    print("KERNEL_OK")
</pallas_src>

<mosaic_0001>
module attributes {stable_mosaic.version = 11 : i64} {
  func.func @_self_attention_kernel(%arg0: i32, %arg1: i32, %arg2: memref<1x8x32xf32, #tpu.memory_space<vmem>>, %arg3: memref<1x8x8xf32, #tpu.memory_space<vmem>>, %arg4: memref<1x32x8xf32, #tpu.memory_space<vmem>>, %arg5: memref<1x1x8xf32, #tpu.memory_space<vmem>>, %arg6: memref<1x32x8xf32, #tpu.memory_space<vmem>>, %arg7: memref<1x1x8xf32, #tpu.memory_space<vmem>>, %arg8: memref<1x32x8xf32, #tpu.memory_space<vmem>>, %arg9: memref<1x1x8xf32, #tpu.memory_space<vmem>>, %arg10: memref<1x1x8x8xf32, #tpu.memory_space<vmem>>) attributes {dimension_semantics = [#tpu.dimension_semantics<parallel>, #tpu.dimension_semantics<parallel>], iteration_bounds = array<i64: 2, 4>, scalar_prefetch = 0 : i64, scratch_operands = 0 : i64, tpu.core_type = #tpu.core_type<tc>, window_params = [{transform_indices = @transform_0, window_bounds = array<i64: 1, 8, 32>}, {transform_indices = @transform_1, window_bounds = array<i64: 1, 8, 8>}, {transform_indices = @transform_2, window_bounds = array<i64: 1, 32, 8>}, {transform_indices = @transform_3, window_bounds = array<i64: 1, 1, 8>}, {transform_indices = @transform_4, window_bounds = array<i64: 1, 32, 8>}, {transform_indices = @transform_5, window_bounds = array<i64: 1, 1, 8>}, {transform_indices = @transform_6, window_bounds = array<i64: 1, 32, 8>}, {transform_indices = @transform_7, window_bounds = array<i64: 1, 1, 8>}, {transform_indices = @transform_8, window_bounds = array<i64: 1, 1, 8, 8>}]} {
    %c0 = arith.constant 0 : index
    %c0_0 = arith.constant 0 : index
    %c0_1 = arith.constant 0 : index
    %0 = vector.load %arg2[%c0, %c0_0, %c0_1] : memref<1x8x32xf32, #tpu.memory_space<vmem>>, vector<1x8x32xf32>
    %1 = vector.shape_cast %0 : vector<1x8x32xf32> to vector<8x32xf32>
    %c0_2 = arith.constant 0 : index
    %c0_3 = arith.constant 0 : index
    %c0_4 = arith.constant 0 : index
    %2 = vector.load %arg4[%c0_2, %c0_3, %c0_4] : memref<1x32x8xf32, #tpu.memory_space<vmem>>, vector<1x32x8xf32>
    %3 = vector.shape_cast %2 : vector<1x32x8xf32> to vector<32x8xf32>
    %cst = arith.constant dense<0.000000e+00> : vector<8x8xf32>
    %4 = tpu.matmul %1, %3, %cst {dimension_numbers = #tpu.dot_dimension_numbers<[1], [0], [0], [1], [0, 0, 1, 1], [], []>} : vector<8x32xf32>, vector<32x8xf32>, vector<8x8xf32> -> vector<8x8xf32>
    %c0_5 = arith.constant 0 : index
    %c0_6 = arith.constant 0 : index
    %c0_7 = arith.constant 0 : index
    %5 = vector.load %arg5[%c0_5, %c0_6, %c0_7] : memref<1x1x8xf32, #tpu.memory_space<vmem>>, vector<1x1x8xf32>
    %6 = vector.shape_cast %5 : vector<1x1x8xf32> to vector<1x8xf32>
    %7 = vector.broadcast %6 : vector<1x8xf32> to vector<8x8xf32>
    %8 = arith.addf %4, %7 : vector<8x8xf32>
    %c0_8 = arith.constant 0 : index
    %c0_9 = arith.constant 0 : index
    %c0_10 = arith.constant 0 : index
    %9 = vector.load %arg6[%c0_8, %c0_9, %c0_10] : memref<1x32x8xf32, #tpu.memory_space<vmem>>, vector<1x32x8xf32>
    %10 = vector.shape_cast %9 : vector<1x32x8xf32> to vector<32x8xf32>
    %cst_11 = arith.constant dense<0.000000e+00> : vector<8x8xf32>
    %11 = tpu.matmul %1, %10, %cst_11 {dimension_numbers = #tpu.dot_dimension_numbers<[1], [0], [0], [1], [0, 0, 1, 1], [], []>} : vector<8x32xf32>, vector<32x8xf32>, vector<8x8xf32> -> vector<8x8xf32>
    %c0_12 = arith.constant 0 : index
    %c0_13 = arith.constant 0 : index
    %c0_14 = arith.constant 0 : index
    %12 = vector.load %arg7[%c0_12, %c0_13, %c0_14] : memref<1x1x8xf32, #tpu.memory_space<vmem>>, vector<1x1x8xf32>
    %13 = vector.shape_cast %12 : vector<1x1x8xf32> to vector<1x8xf32>
    %14 = vector.broadcast %13 : vector<1x8xf32> to vector<8x8xf32>
    %15 = arith.addf %11, %14 : vector<8x8xf32>
    %c0_15 = arith.constant 0 : index
    %c0_16 = arith.constant 0 : index
    %c0_17 = arith.constant 0 : index
    %16 = vector.load %arg8[%c0_15, %c0_16, %c0_17] : memref<1x32x8xf32, #tpu.memory_space<vmem>>, vector<1x32x8xf32>
    %17 = vector.shape_cast %16 : vector<1x32x8xf32> to vector<32x8xf32>
    %cst_18 = arith.constant dense<0.000000e+00> : vector<8x8xf32>
    %18 = tpu.matmul %1, %17, %cst_18 {dimension_numbers = #tpu.dot_dimension_numbers<[1], [0], [0], [1], [0, 0, 1, 1], [], []>} : vector<8x32xf32>, vector<32x8xf32>, vector<8x8xf32> -> vector<8x8xf32>
    %c0_19 = arith.constant 0 : index
    %c0_20 = arith.constant 0 : index
    %c0_21 = arith.constant 0 : index
    %19 = vector.load %arg9[%c0_19, %c0_20, %c0_21] : memref<1x1x8xf32, #tpu.memory_space<vmem>>, vector<1x1x8xf32>
    %20 = vector.shape_cast %19 : vector<1x1x8xf32> to vector<1x8xf32>
    %21 = vector.broadcast %20 : vector<1x8xf32> to vector<8x8xf32>
    %22 = arith.addf %18, %21 : vector<8x8xf32>
    %cst_22 = arith.constant dense<0.000000e+00> : vector<8x8xf32>
    %23 = tpu.matmul %8, %15, %cst_22 {dimension_numbers = #tpu.dot_dimension_numbers<[1], [1], [0], [0], [0, 0, 1, 0], [], []>} : vector<8x8xf32>, vector<8x8xf32>, vector<8x8xf32> -> vector<8x8xf32>
    %cst_23 = arith.constant 0.353553385 : f32
    %24 = vector.broadcast %cst_23 : f32 to vector<8x8xf32>
    %25 = arith.mulf %23, %24 : vector<8x8xf32>
    %c0_24 = arith.constant 0 : index
    %c0_25 = arith.constant 0 : index
    %c0_26 = arith.constant 0 : index
    %26 = vector.load %arg3[%c0_24, %c0_25, %c0_26] : memref<1x8x8xf32, #tpu.memory_space<vmem>>, vector<1x8x8xf32>
    %27 = vector.shape_cast %26 : vector<1x8x8xf32> to vector<8x8xf32>
    %28 = arith.addf %25, %27 : vector<8x8xf32>
    %cst_27 = arith.constant dense<0xFF800000> : vector<8xf32>
    %29 = vector.multi_reduction <maximumf>, %28, %cst_27 [1] : vector<8x8xf32> to vector<8xf32>
    %30 = vector.shape_cast %29 : vector<8xf32> to vector<8x1xf32>
    %31 = vector.broadcast %30 : vector<8x1xf32> to vector<8x8xf32>
    %32 = arith.subf %28, %31 : vector<8x8xf32>
    %33 = math.exp %32 : vector<8x8xf32>
    %cst_28 = arith.constant dense<0.000000e+00> : vector<8xf32>
    %34 = vector.multi_reduction <add>, %33, %cst_28 [1] : vector<8x8xf32> to vector<8xf32>
    %35 = vector.shape_cast %34 : vector<8xf32> to vector<8x1xf32>
    %36 = vector.broadcast %35 : vector<8x1xf32> to vector<8x8xf32>
    %37 = arith.divf %33, %36 : vector<8x8xf32>
    %cst_29 = arith.constant dense<0.000000e+00> : vector<8x8xf32>
    %38 = tpu.matmul %37, %22, %cst_29 {dimension_numbers = #tpu.dot_dimension_numbers<[1], [0], [0], [1], [0, 0, 1, 1], [], []>} : vector<8x8xf32>, vector<8x8xf32>, vector<8x8xf32> -> vector<8x8xf32>
    %c0_30 = arith.constant 0 : index
    %c0_31 = arith.constant 0 : index
    %c0_32 = arith.constant 0 : index
    %c0_33 = arith.constant 0 : index
    %39 = vector.load %arg10[%c0_30, %c0_31, %c0_32, %c0_33] : memref<1x1x8x8xf32, #tpu.memory_space<vmem>>, vector<1x1x8x8xf32>
    %40 = vector.shape_cast %39 : vector<1x1x8x8xf32> to vector<8x8xf32>
    %41 = vector.shape_cast %38 : vector<8x8xf32> to vector<1x1x8x8xf32>
    tpu.vector_store %arg10[%c0_30, %c0_31, %c0_32, %c0_33], %41 {strides = array<i32>} : memref<1x1x8x8xf32, #tpu.memory_space<vmem>>, vector<1x1x8x8xf32>,
    return
  }
  func.func @transform_0(%arg0: i32, %arg1: i32) -> (i32, i32, i32) {
    %c0_i32 = arith.constant 0 : i32
    %c0_i32_0 = arith.constant 0 : i32
    %c0_i32_1 = arith.constant 0 : i32
    return %arg0, %c0_i32, %c0_i32_0 : i32, i32, i32
  }
  func.func @transform_1(%arg0: i32, %arg1: i32) -> (i32, i32, i32) {
    %c0_i32 = arith.constant 0 : i32
    %c0_i32_0 = arith.constant 0 : i32
    %c0_i32_1 = arith.constant 0 : i32
    return %arg0, %c0_i32, %c0_i32_0 : i32, i32, i32
  }
  func.func @transform_2(%arg0: i32, %arg1: i32) -> (i32, i32, i32) {
    %c0_i32 = arith.constant 0 : i32
    %c0_i32_0 = arith.constant 0 : i32
    %c0_i32_1 = arith.constant 0 : i32
    return %arg1, %c0_i32, %c0_i32_0 : i32, i32, i32
  }
  func.func @transform_3(%arg0: i32, %arg1: i32) -> (i32, i32, i32) {
    %c0_i32 = arith.constant 0 : i32
    %c0_i32_0 = arith.constant 0 : i32
    %c0_i32_1 = arith.constant 0 : i32
    return %arg1, %c0_i32, %c0_i32_0 : i32, i32, i32
  }
  func.func @transform_4(%arg0: i32, %arg1: i32) -> (i32, i32, i32) {
    %c0_i32 = arith.constant 0 : i32
    %c0_i32_0 = arith.constant 0 : i32
    %c0_i32_1 = arith.constant 0 : i32
    return %arg1, %c0_i32, %c0_i32_0 : i32, i32, i32
  }
  func.func @transform_5(%arg0: i32, %arg1: i32) -> (i32, i32, i32) {
    %c0_i32 = arith.constant 0 : i32
    %c0_i32_0 = arith.constant 0 : i32
    %c0_i32_1 = arith.constant 0 : i32
    return %arg1, %c0_i32, %c0_i32_0 : i32, i32, i32
  }
  func.func @transform_6(%arg0: i32, %arg1: i32) -> (i32, i32, i32) {
    %c0_i32 = arith.constant 0 : i32
    %c0_i32_0 = arith.constant 0 : i32
    %c0_i32_1 = arith.constant 0 : i32
    return %arg1, %c0_i32, %c0_i32_0 : i32, i32, i32
  }
  func.func @transform_7(%arg0: i32, %arg1: i32) -> (i32, i32, i32) {
    %c0_i32 = arith.constant 0 : i32
    %c0_i32_0 = arith.constant 0 : i32
    %c0_i32_1 = arith.constant 0 : i32
    return %arg1, %c0_i32, %c0_i32_0 : i32, i32, i32
  }
  func.func @transform_8(%arg0: i32, %arg1: i32) -> (i32, i32, i32, i32) {
    %c0_i32 = arith.constant 0 : i32
    %c0_i32_0 = arith.constant 0 : i32
    %c0_i32_1 = arith.constant 0 : i32
    return %arg0, %arg1, %c0_i32, %c0_i32_0 : i32, i32, i32, i32
  }
}

</mosaic_0001>

<llo_original>
// kernel: tpu_custom_call.1
$region0: #{tpu_custom_call.1}
  #allocation0 [shape = 'u32[]', space=smem, size = 0x4, offset = 0x4, fixed_abs, tag = 'smem constant byte address 0x4 - core index']
  #allocation1 [shape = 'u32[144,128]{1,0:T(1,128)}', space=vmem, size = 0x12000, scoped, tag = 'internal scratch']
  %s0 = inlined_call_operand.hbm [shape: f32[2,8,32], index: 0, kind: input, shape index: {}]
  %s1 = inlined_call_operand.hbm [shape: f32[2,8,8], index: 1, kind: input, shape index: {}]
  %s2 = inlined_call_operand.hbm [shape: f32[4,32,8], index: 2, kind: input, shape index: {}]
  %s3 = inlined_call_operand.hbm [shape: f32[4,1,8], index: 3, kind: input, shape index: {}]
  %s4 = inlined_call_operand.hbm [shape: f32[4,32,8], index: 4, kind: input, shape index: {}]
  %s5 = inlined_call_operand.hbm [shape: f32[4,1,8], index: 5, kind: input, shape index: {}]
  %s6 = inlined_call_operand.hbm [shape: f32[4,32,8], index: 6, kind: input, shape index: {}]
  %s7 = inlined_call_operand.hbm [shape: f32[4,1,8], index: 7, kind: input, shape index: {}]
  %s8 = inlined_call_operand.hbm [shape: f32[2,4,8,8], index: 8, kind: output, shape index: {}]
  %s9 = sld [smem:[#allocation0]]
  $region97: #{tpu_custom_call.1} parent=0
    _
  %s11 = ssub.s32 1, %s9
  %s12 = scalar_select 0, %s11, %s9
  $region1: #{tpu_custom_call.1} parent=0
    #allocation2 [shape = 'u8[8192]{0}', space=vmem, size = 0x2000, scoped, tag = 'input window, operand 0']
    #allocation3 [shape = 's32[2]{0}', space=sflag, size = 0x8, scoped, tag = 'scoped memory for tpu_custom_call.1']
    #allocation4 [shape = 's32[2]{0}', space=sflag, size = 0x8, scoped, tag = 'scoped memory for tpu_custom_call.1']
    #allocation5 [shape = 'u8[8192]{0}', space=vmem, size = 0x2000, scoped, tag = 'input window, operand 1']
    #allocation6 [shape = 's32[2]{0}', space=sflag, size = 0x8, scoped, tag = 'scoped memory for tpu_custom_call.1']
    #allocation7 [shape = 'u8[32768]{0}', space=vmem, size = 0x8000, scoped, tag = 'input window, operand 2']
    #allocation8 [shape = 'u8[1024]{0}', space=vmem, size = 0x400, scoped, tag = 'input window, operand 3']
    #allocation9 [shape = 's32[2]{0}', space=sflag, size = 0x8, scoped, tag = 'scoped memory for tpu_custom_call.1']
    #allocation10 [shape = 'u8[32768]{0}', space=vmem, size = 0x8000, scoped, tag = 'input window, operand 4']
    #allocation11 [shape = 'u8[1024]{0}', space=vmem, size = 0x400, scoped, tag = 'input window, operand 5']
    #allocation12 [shape = 's32[2]{0}', space=sflag, size = 0x8, scoped, tag = 'scoped memory for tpu_custom_call.1']
    #allocation13 [shape = 'u8[32768]{0}', space=vmem, size = 0x8000, scoped, tag = 'input window, operand 6']
    #allocation14 [shape = 'u8[1024]{0}', space=vmem, size = 0x400, scoped, tag = 'input window, operand 7']
    #allocation15 [shape = 's32[2]{0}', space=sflag, size = 0x8, scoped, tag = 'scoped memory for tpu_custom_call.1']
    #allocation16 [shape = 'u8[8192]{0}', space=vmem, size = 0x2000, scoped, tag = 'output window, operand 0']
    %13 = vsyncpa [#allocation3], 0
    %s14 = scalar_lea.sflag [#allocation3], 1
    %15 = vsyncpa %s14, 0
    %16 = vsyncpa [#allocation6], 0
    %s17 = scalar_lea.sflag [#allocation6], 1
    %18 = vsyncpa %s17, 0
    %19 = vsyncpa [#allocation9], 0
    %s20 = scalar_lea.sflag [#allocation9], 1
    %21 = vsyncpa %s20, 0
    %22 = vsyncpa [#allocation12], 0
    %s23 = scalar_lea.sflag [#allocation12], 1
    %24 = vsyncpa %s23, 0
    %25 = vsyncpa [#allocation15], 0
    %s26 = scalar_lea.sflag [#allocation15], 1
    %27 = vsyncpa %s26, 0
    %28 = vsyncpa [#allocation4], 0
    %s29 = scalar_lea.sflag [#allocation4], 1
    %30 = vsyncpa %s29, 0
    loop: start=0, step=1, limit=10
    $region2: #{tpu_custom_call.1} parent=1 // loop_pre_header
      _
    $region3: #{tpu_custom_call.1} parent=1 // loop_header
      %s32 = sphi 0, %s36
      %p33 = scmp.ge.s32.totalorder %s32, 10
      %s39 = sphi 0, %s51
      %s40 = sphi 0, %s47
      %s41 = sphi 0, %s39
      %s42 = sphi 0, %s40
      %s43 = sphi 0, %s41
      %s44 = sphi 0, %s42
      %s54 = sphi 0, %s56
      %s57 = sphi 0, %s54
      %s58 = sphi 0, %s57
      %s74 = sphi 0, %s58
      %s80 = sphi 0, %s82
      %s83 = sphi 0, %s80
      %s84 = sphi 0, %s83
      %s100 = sphi 0, %s84
      %s106 = sphi 0, %s108
      %s109 = sphi 0, %s106
      %s110 = sphi 0, %s109
      %s126 = sphi 0, %s110
      %s132 = sphi 0, %s134
      %s135 = sphi 0, %s132
      %s136 = sphi 0, %s135
      %s152 = sphi 0, %s136
      %s158 = sphi 0, %s160
      %s161 = sphi 0, %s158
      %s162 = sphi 0, %s161
      %s178 = sphi 0, %s162
      %s184 = sphi 0, %s186
      %s187 = sphi 0, %s184
      %s188 = sphi 0, %s187
      %s204 = sphi 0, %s188
      %s210 = sphi 0, %s212
      %s213 = sphi 0, %s210
      %s214 = sphi 0, %s213
      %s230 = sphi 0, %s214
      %s236 = sphi 0, %s238
      %s239 = sphi 0, %s236
      %s240 = sphi 0, %s239
      %s256 = sphi 0, %s240
      %s264 = sphi 0, %s266
      %s267 = sphi 0, %s264
      %s268 = sphi 0, %s267
      %s284 = sphi 0, %s268
    $region4: #{tpu_custom_call.1} parent=1 // loop_header_branch
      %35 = sbr.rel (%p33) target = $region8
    $region5: #{tpu_custom_call.1} parent=1 // loop_body
      %s37 = ssub.s32 %s32, 1
      %s38 = ssub.s32 %s32, 2
      %s45 = sadd.s32 1, %s40
      %p46 = scmp.ge.s32.totalorder %s45, 4
      %s47 = scalar_select %p46, 0, %s45
      %s48 = sadd.s32 1, %s39
      %s49 = scalar_select %p46, %s48, %s39
      %p50 = scmp.ge.s32.totalorder %s49, 2
      %s51 = scalar_select %p50, 0, %s49
      %s52 = ssub.s32 %s39, %s51
      %p53 = scmp.eq.s32.totalorder %s52, 0
      %s55 = sadd.s32 %s54, 1
      %s56 = scalar_select %p53, %s54, %s55
      %p59 = pneg %p53
      %p60 = scmp.eq.s32.totalorder %s32, 7
      %p61 = por %p59, %p60
      %p62 = scmp.ne.s32.totalorder %s54, %s57
      %p63 = scmp.eq.s32.totalorder %s32, 0
      %p64 = por %p62, %p63
      %p65 = scmp.ne.s32.totalorder %s54, %s57
      %p66 = scmp.eq.s32.totalorder %s37, 7
      %p67 = por %p65, %p66
      %p68 = scmp.ne.s32.totalorder %s57, %s58
      %p69 = scmp.eq.s32.totalorder %s37, 0
      %p70 = por %p68, %p69
      %p71 = scmp.ne.s32.totalorder %s57, %s58
      %p72 = scmp.eq.s32.totalorder %s38, 7
      %p73 = por %p71, %p72
      %p75 = scmp.ne.s32.totalorder %s58, %s74
      %p76 = scmp.eq.s32.totalorder %s38, 0
      %p77 = por %p75, %p76
      %s78 = ssub.s32 %s39, %s51
      %p79 = scmp.eq.s32.totalorder %s78, 0
      %s81 = sadd.s32 %s80, 1
      %s82 = scalar_select %p79, %s80, %s81
      %p85 = pneg %p79
      %p86 = scmp.eq.s32.totalorder %s32, 7
      %p87 = por %p85, %p86
      %p88 = scmp.ne.s32.totalorder %s80, %s83
      %p89 = scmp.eq.s32.totalorder %s32, 0
      %p90 = por %p88, %p89
      %p91 = scmp.ne.s32.totalorder %s80, %s83
      %p92 = scmp.eq.s32.totalorder %s37, 7
      %p93 = por %p91, %p92
      %p94 = scmp.ne.s32.totalorder %s83, %s84
      %p95 = scmp.eq.s32.totalorder %s37, 0
      %p96 = por %p94, %p95
      %p97 = scmp.ne.s32.totalorder %s83, %s84
      %p98 = scmp.eq.s32.totalorder %s38, 7
      %p99 = por %p97, %p98
      %p101 = scmp.ne.s32.totalorder %s84, %s100
      %p102 = scmp.eq.s32.totalorder %s38, 0
      %p103 = por %p101, %p102
      %s104 = ssub.s32 %s40, %s47
      %p105 = scmp.eq.s32.totalorder %s104, 0
      %s107 = sadd.s32 %s106, 1
      %s108 = scalar_select %p105, %s106, %s107
      %p111 = pneg %p105
      %p112 = scmp.eq.s32.totalorder %s32, 7
      %p113 = por %p111, %p112
      %p114 = scmp.ne.s32.totalorder %s106, %s109
      %p115 = scmp.eq.s32.totalorder %s32, 0
      %p116 = por %p114, %p115
      %p117 = scmp.ne.s32.totalorder %s106, %s109
      %p118 = scmp.eq.s32.totalorder %s37, 7
      %p119 = por %p117, %p118
      %p120 = scmp.ne.s32.totalorder %s109, %s110
      %p121 = scmp.eq.s32.totalorder %s37, 0
      %p122 = por %p120, %p121
      %p123 = scmp.ne.s32.totalorder %s109, %s110
      %p124 = scmp.eq.s32.totalorder %s38, 7
      %p125 = por %p123, %p124
      %p127 = scmp.ne.s32.totalorder %s110, %s126
      %p128 = scmp.eq.s32.totalorder %s38, 0
      %p129 = por %p127, %p128
      %s130 = ssub.s32 %s40, %s47
      %p131 = scmp.eq.s32.totalorder %s130, 0
      %s133 = sadd.s32 %s132, 1
      %s134 = scalar_select %p131, %s132, %s133
      %p137 = pneg %p131
      %p138 = scmp.eq.s32.totalorder %s32, 7
      %p139 = por %p137, %p138
      %p140 = scmp.ne.s32.totalorder %s132, %s135
      %p141 = scmp.eq.s32.totalorder %s32, 0
      %p142 = por %p140, %p141
      %p143 = scmp.ne.s32.totalorder %s132, %s135
      %p144 = scmp.eq.s32.totalorder %s37, 7
      %p145 = por %p143, %p144
      %p146 = scmp.ne.s32.totalorder %s135, %s136
      %p147 = scmp.eq.s32.totalorder %s37, 0
      %p148 = por %p146, %p147
      %p149 = scmp.ne.s32.totalorder %s135, %s136
      %p150 = scmp.eq.s32.totalorder %s38, 7
      %p151 = por %p149, %p150
      %p153 = scmp.ne.s32.totalorder %s136, %s152
      %p154 = scmp.eq.s32.totalorder %s38, 0
      %p155 = por %p153, %p154
      %s156 = ssub.s32 %s40, %s47
      %p157 = scmp.eq.s32.totalorder %s156, 0
      %s159 = sadd.s32 %s158, 1
      %s160 = scalar_select %p157, %s158, %s159
      %p163 = pneg %p157
      %p164 = scmp.eq.s32.totalorder %s32, 7
      %p165 = por %p163, %p164
      %p166 = scmp.ne.s32.totalorder %s158, %s161
      %p167 = scmp.eq.s32.totalorder %s32, 0
      %p168 = por %p166, %p167
      %p169 = scmp.ne.s32.totalorder %s158, %s161
      %p170 = scmp.eq.s32.totalorder %s37, 7
      %p171 = por %p169, %p170
      %p172 = scmp.ne.s32.totalorder %s161, %s162
      %p173 = scmp.eq.s32.totalorder %s37, 0
      %p174 = por %p172, %p173
      %p175 = scmp.ne.s32.totalorder %s161, %s162
      %p176 = scmp.eq.s32.totalorder %s38, 7
      %p177 = por %p175, %p176
      %p179 = scmp.ne.s32.totalorder %s162, %s178
      %p180 = scmp.eq.s32.totalorder %s38, 0
      %p181 = por %p179, %p180
      %s182 = ssub.s32 %s40, %s47
      %p183 = scmp.eq.s32.totalorder %s182, 0
      %s185 = sadd.s32 %s184, 1
      %s186 = scalar_select %p183, %s184, %s185
      %p189 = pneg %p183
      %p190 = scmp.eq.s32.totalorder %s32, 7
      %p191 = por %p189, %p190
      %p192 = scmp.ne.s32.totalorder %s184, %s187
      %p193 = scmp.eq.s32.totalorder %s32, 0
      %p194 = por %p192, %p193
      %p195 = scmp.ne.s32.totalorder %s184, %s187
      %p196 = scmp.eq.s32.totalorder %s37, 7
      %p197 = por %p195, %p196
      %p198 = scmp.ne.s32.totalorder %s187, %s188
      %p199 = scmp.eq.s32.totalorder %s37, 0
      %p200 = por %p198, %p199
      %p201 = scmp.ne.s32.totalorder %s187, %s188
      %p202 = scmp.eq.s32.totalorder %s38, 7
      %p203 = por %p201, %p202
      %p205 = scmp.ne.s32.totalorder %s188, %s204
      %p206 = scmp.eq.s32.totalorder %s38, 0
      %p207 = por %p205, %p206
      %s208 = ssub.s32 %s40, %s47
      %p209 = scmp.eq.s32.totalorder %s208, 0
      %s211 = sadd.s32 %s210, 1
      %s212 = scalar_select %p209, %s210, %s211
      %p215 = pneg %p209
      %p216 = scmp.eq.s32.totalorder %s32, 7
      %p217 = por %p215, %p216
      %p218 = scmp.ne.s32.totalorder %s210, %s213
      %p219 = scmp.eq.s32.totalorder %s32, 0
      %p220 = por %p218, %p219
      %p221 = scmp.ne.s32.totalorder %s210, %s213
      %p222 = scmp.eq.s32.totalorder %s37, 7
      %p223 = por %p221, %p222
      %p224 = scmp.ne.s32.totalorder %s213, %s214
      %p225 = scmp.eq.s32.totalorder %s37, 0
      %p226 = por %p224, %p225
      %p227 = scmp.ne.s32.totalorder %s213, %s214
      %p228 = scmp.eq.s32.totalorder %s38, 7
      %p229 = por %p227, %p228
      %p231 = scmp.ne.s32.totalorder %s214, %s230
      %p232 = scmp.eq.s32.totalorder %s38, 0
      %p233 = por %p231, %p232
      %s234 = ssub.s32 %s40, %s47
      %p235 = scmp.eq.s32.totalorder %s234, 0
      %s237 = sadd.s32 %s236, 1
      %s238 = scalar_select %p235, %s236, %s237
      %p241 = pneg %p235
      %p242 = scmp.eq.s32.totalorder %s32, 7
      %p243 = por %p241, %p242
      %p244 = scmp.ne.s32.totalorder %s236, %s239
      %p245 = scmp.eq.s32.totalorder %s32, 0
      %p246 = por %p244, %p245
      %p247 = scmp.ne.s32.totalorder %s236, %s239
      %p248 = scmp.eq.s32.totalorder %s37, 7
      %p249 = por %p247, %p248
      %p250 = scmp.ne.s32.totalorder %s239, %s240
      %p251 = scmp.eq.s32.totalorder %s37, 0
      %p252 = por %p250, %p251
      %p253 = scmp.ne.s32.totalorder %s239, %s240
      %p254 = scmp.eq.s32.totalorder %s38, 7
      %p255 = por %p253, %p254
      %p257 = scmp.ne.s32.totalorder %s240, %s256
      %p258 = scmp.eq.s32.totalorder %s38, 0
      %p259 = por %p257, %p258
      %s260 = ssub.s32 %s39, %s51
      %s261 = ssub.s32 %s40, %s47
      %s262 = sor.u32 %s260, %s261
      %p263 = scmp.eq.s32.totalorder %s262, 0
      %s265 = sadd.s32 %s264, 1
      %s266 = scalar_select %p263, %s264, %s265
      %p269 = pneg %p263
      %p270 = scmp.eq.s32.totalorder %s32, 7
      %p271 = por %p269, %p270
      %p272 = scmp.ne.s32.totalorder %s264, %s267
      %p273 = scmp.eq.s32.totalorder %s32, 0
      %p274 = por %p272, %p273
      %p275 = scmp.ne.s32.totalorder %s264, %s267
      %p276 = scmp.eq.s32.totalorder %s37, 7
      %p277 = por %p275, %p276
      %p278 = scmp.ne.s32.totalorder %s267, %s268
      %p279 = scmp.eq.s32.totalorder %s37, 0
      %p280 = por %p278, %p279
      %p281 = scmp.ne.s32.totalorder %s267, %s268
      %p282 = scmp.eq.s32.totalorder %s38, 7
      %p283 = por %p281, %p282
      %p285 = scmp.ne.s32.totalorder %s268, %s284
      %p286 = scmp.eq.s32.totalorder %s38, 0
      %p287 = por %p285, %p286
      %p288 = scmp.le.s32.totalorder 1, %s32
      %p289 = scmp.lt.s32.totalorder %s32, 9
      %p290 = pnand %p288, %p289
      %p291 = pneg %p290
      // Predicated region
      $region9: #{tpu_custom_call.1} parent=5 // pred_check
        _
      $region10: #{tpu_custom_call.1} parent=5 // pred_check_branch
        %293 = sbr.rel (%p290) target = $region12
      $region11: #{tpu_custom_call.1} parent=5 // pred_region
        %s294 = ssub.s32 %s32, 1
      $region12: #{tpu_custom_call.1} parent=5 // pred_fallthru
        _
      %p295 = scmp.lt.s32.totalorder %s32, 8
      // Predicated region
      $region13: #{tpu_custom_call.1} parent=5 // pred_check
        %p296 = pneg %p295
      $region14: #{tpu_custom_call.1} parent=5 // pred_check_branch
        %298 = sbr.rel (%p296) target = $region16
      $region15: #{tpu_custom_call.1} parent=5 // pred_region
        // Predicated region
        $region17: #{tpu_custom_call.1} parent=15 // pred_check
          %p299 = pneg %p64
        $region18: #{tpu_custom_call.1} parent=15 // pred_check_branch
          %301 = sbr.rel (%p299) target = $region20
        $region19: #{tpu_custom_call.1} parent=15 // pred_region
          %s302 = sand.u32 %s54, 1
          %s303 = scalar_lea.sflag [#allocation3], %s302
          %s304 = sand.u32 %s54, 1
          %s305 = smul.addr %s304, 8
          %s306 = scalar_lea.vmem [#allocation2], %s305
          %s308 = ssub.s32 128, 128
          %309 = vsyncadd %s303, %s308
          %s310 = smul.addr %s39, 128
          %s311 = scalar_lea.hbm %s0, %s310
          %s313 = sshll.u32 %s306, 4
          %s314 = int_to_ptr.vmem [resolvable:$true] %s313
          %316 = dma.hbm_to_vmem [thread:$0]  %s311, 128, %s314, %s303
        $region20: #{tpu_custom_call.1} parent=15 // pred_fallthru
          _
        // Predicated region
        $region21: #{tpu_custom_call.1} parent=15 // pred_check
          %p317 = pneg %p90
        $region22: #{tpu_custom_call.1} parent=15 // pred_check_branch
          %319 = sbr.rel (%p317) target = $region24
        $region23: #{tpu_custom_call.1} parent=15 // pred_region
          %s320 = sand.u32 %s32, 1
          %s321 = scalar_lea.sflag [#allocation6], %s320
          %s322 = sand.u32 %s80, 1
          %s323 = smul.addr %s322, 8
          %s324 = scalar_lea.vmem [#allocation5], %s323
          %s326 = ssub.s32 128, 128
          %327 = vsyncadd %s321, %s326
          %s328 = smul.addr %s39, 128
          %s329 = scalar_lea.hbm %s1, %s328
          %s331 = sshll.u32 %s324, 4
          %s332 = int_to_ptr.vmem [resolvable:$true] %s331
          %334 = dma.hbm_to_vmem [thread:$0]  %s329, 128, %s332, %s321
        $region24: #{tpu_custom_call.1} parent=15 // pred_fallthru
          _
        // Predicated region
        $region25: #{tpu_custom_call.1} parent=15 // pred_check
          %p335 = pneg %p116
        $region26: #{tpu_custom_call.1} parent=15 // pred_check_branch
          %337 = sbr.rel (%p335) target = $region28
        $region27: #{tpu_custom_call.1} parent=15 // pred_region
          %s338 = sand.u32 %s32, 1
          %s339 = scalar_lea.sflag [#allocation6], %s338
          %s340 = sand.u32 %s106, 1
          %s341 = smul.addr %s340, 32
          %s342 = scalar_lea.vmem [#allocation7], %s341
          %s344 = ssub.s32 512, 512
          %345 = vsyncadd %s339, %s344
          %s346 = smul.addr %s40, 4
          %s347 = smul.addr %s346, 128
          %s348 = scalar_lea.hbm %s2, %s347
          %s349 = sshll.u32 %s342, 4
          %s350 = int_to_ptr.vmem [resolvable:$true] %s349
          %355 = dma.hbm_to_vmem [thread:$0]  %s348, 512, %s350, %s339, 128, 128, 8
        $region28: #{tpu_custom_call.1} parent=15 // pred_fallthru
          _
        // Predicated region
        $region29: #{tpu_custom_call.1} parent=15 // pred_check
          %p356 = pneg %p142
        $region30: #{tpu_custom_call.1} parent=15 // pred_check_branch
          %358 = sbr.rel (%p356) target = $region32
        $region31: #{tpu_custom_call.1} parent=15 // pred_region
          %s359 = sand.u32 %s32, 1
          %s360 = scalar_lea.sflag [#allocation9], %s359
          %s361 = sand.u32 %s132, 1
          %s362 = scalar_lea.vmem [#allocation8], %s361
          %s364 = ssub.s32 16, 16
          %365 = vsyncadd %s360, %s364
          %s366 = smul.addr %s40, 16
          %s367 = scalar_lea.hbm %s3, %s366
          %s369 = sshll.u32 %s362, 4
          %s370 = int_to_ptr.vmem [resolvable:$true] %s369
          %372 = dma.hbm_to_vmem [thread:$0]  %s367, 16, %s370, %s360
        $region32: #{tpu_custom_call.1} parent=15 // pred_fallthru
          _
        // Predicated region
        $region33: #{tpu_custom_call.1} parent=15 // pred_check
          %p373 = pneg %p168
        $region34: #{tpu_custom_call.1} parent=15 // pred_check_branch
          %375 = sbr.rel (%p373) target = $region36
        $region35: #{tpu_custom_call.1} parent=15 // pred_region
          %s376 = sand.u32 %s32, 1
          %s377 = scalar_lea.sflag [#allocation9], %s376
          %s378 = sand.u32 %s158, 1
          %s379 = smul.addr %s378, 32
          %s380 = scalar_lea.vmem [#allocation10], %s379
          %s382 = ssub.s32 512, 512
          %383 = vsyncadd %s377, %s382
          %s384 = smul.addr %s40, 4
          %s385 = smul.addr %s384, 128
          %s386 = scalar_lea.hbm %s4, %s385
          %s387 = sshll.u32 %s380, 4
          %s388 = int_to_ptr.vmem [resolvable:$true] %s387
          %393 = dma.hbm_to_vmem [thread:$0]  %s386, 512, %s388, %s377, 128, 128, 8
        $region36: #{tpu_custom_call.1} parent=15 // pred_fallthru
          _
        // Predicated region
        $region37: #{tpu_custom_call.1} parent=15 // pred_check
          %p394 = pneg %p194
        $region38: #{tpu_custom_call.1} parent=15 // pred_check_branch
          %396 = sbr.rel (%p394) target = $region40
        $region39: #{tpu_custom_call.1} parent=15 // pred_region
          %s397 = sand.u32 %s32, 1
          %s398 = scalar_lea.sflag [#allocation12], %s397
          %s399 = sand.u32 %s184, 1
          %s400 = scalar_lea.vmem [#allocation11], %s399
          %s402 = ssub.s32 16, 16
          %403 = vsyncadd %s398, %s402
          %s404 = smul.addr %s40, 16
          %s405 = scalar_lea.hbm %s5, %s404
          %s407 = sshll.u32 %s400, 4
          %s408 = int_to_ptr.vmem [resolvable:$true] %s407
          %410 = dma.hbm_to_vmem [thread:$0]  %s405, 16, %s408, %s398
        $region40: #{tpu_custom_call.1} parent=15 // pred_fallthru
          _
        // Predicated region
        $region41: #{tpu_custom_call.1} parent=15 // pred_check
          %p411 = pneg %p220
        $region42: #{tpu_custom_call.1} parent=15 // pred_check_branch
          %413 = sbr.rel (%p411) target = $region44
        $region43: #{tpu_custom_call.1} parent=15 // pred_region
          %s414 = sand.u32 %s32, 1
          %s415 = scalar_lea.sflag [#allocation12], %s414
          %s416 = sand.u32 %s210, 1
          %s417 = smul.addr %s416, 32
          %s418 = scalar_lea.vmem [#allocation13], %s417
          %s420 = ssub.s32 512, 512
          %421 = vsyncadd %s415, %s420
          %s422 = smul.addr %s40, 4
          %s423 = smul.addr %s422, 128
          %s424 = scalar_lea.hbm %s6, %s423
          %s425 = sshll.u32 %s418, 4
          %s426 = int_to_ptr.vmem [resolvable:$true] %s425
          %431 = dma.hbm_to_vmem [thread:$0]  %s424, 512, %s426, %s415, 128, 128, 8
        $region44: #{tpu_custom_call.1} parent=15 // pred_fallthru
          _
        // Predicated region
        $region45: #{tpu_custom_call.1} parent=15 // pred_check
          %p432 = pneg %p246
        $region46: #{tpu_custom_call.1} parent=15 // pred_check_branch
          %434 = sbr.rel (%p432) target = $region48
        $region47: #{tpu_custom_call.1} parent=15 // pred_region
          %s435 = sand.u32 %s236, 1
          %s436 = scalar_lea.sflag [#allocation15], %s435
          %s437 = sand.u32 %s236, 1
          %s438 = scalar_lea.vmem [#allocation14], %s437
          %s440 = ssub.s32 16, 16
          %441 = vsyncadd %s436, %s440
          %s442 = smul.addr %s40, 16
          %s443 = scalar_lea.hbm %s7, %s442
          %s445 = sshll.u32 %s438, 4
          %s446 = int_to_ptr.vmem [resolvable:$true] %s445
          %448 = dma.hbm_to_vmem [thread:$0]  %s443, 16, %s446, %s436
        $region48: #{tpu_custom_call.1} parent=15 // pred_fallthru
          _
      $region16: #{tpu_custom_call.1} parent=5 // pred_fallthru
        _
      %p449 = scmp.le.s32.totalorder 1, %s32
      %p450 = scmp.lt.s32.totalorder %s32, 9
      %p451 = pnand %p449, %p450
      %p452 = pneg %p451
      // Predicated region
      $region49: #{tpu_custom_call.1} parent=5 // pred_check
        _
      $region50: #{tpu_custom_call.1} parent=5 // pred_check_branch
        %454 = sbr.rel (%p451) target = $region52
      $region51: #{tpu_custom_call.1} parent=5 // pred_region
        %s455 = ssub.s32 %s32, 1
        %s456 = sand.u32 %s57, 1
        %s457 = scalar_lea.sflag [#allocation3], %s456
        %s458 = sand.u32 %s57, 1
        %s459 = smul.addr %s458, 8
        %s460 = scalar_lea.vmem [#allocation2], %s459
        // Predicated region
        $region53: #{tpu_custom_call.1} parent=51 // pred_check
          %p461 = pneg %p70
        $region54: #{tpu_custom_call.1} parent=51 // pred_check_branch
          %463 = sbr.rel (%p461) target = $region56
        $region55: #{tpu_custom_call.1} parent=51 // pred_region
          %464 = dma.done %s457, 128
        $region56: #{tpu_custom_call.1} parent=51 // pred_fallthru
          _
        %s465 = sand.u32 %s37, 1
        %s466 = scalar_lea.sflag [#allocation6], %s465
        %s467 = sand.u32 %s83, 1
        %s468 = smul.addr %s467, 8
        %s469 = scalar_lea.vmem [#allocation5], %s468
        // Predicated region
        $region57: #{tpu_custom_call.1} parent=51 // pred_check
          %p470 = pneg %p96
        $region58: #{tpu_custom_call.1} parent=51 // pred_check_branch
          %472 = sbr.rel (%p470) target = $region60
        $region59: #{tpu_custom_call.1} parent=51 // pred_region
          %473 = dma.done %s466, 128
        $region60: #{tpu_custom_call.1} parent=51 // pred_fallthru
          _
        %s474 = sand.u32 %s37, 1
        %s475 = scalar_lea.sflag [#allocation6], %s474
        %s476 = sand.u32 %s109, 1
        %s477 = smul.addr %s476, 32
        %s478 = scalar_lea.vmem [#allocation7], %s477
        // Predicated region
        $region61: #{tpu_custom_call.1} parent=51 // pred_check
          %p479 = pneg %p122
        $region62: #{tpu_custom_call.1} parent=51 // pred_check_branch
          %481 = sbr.rel (%p479) target = $region64
        $region63: #{tpu_custom_call.1} parent=51 // pred_region
          %482 = dma.done %s475, 512
        $region64: #{tpu_custom_call.1} parent=51 // pred_fallthru
          _
        %s483 = sand.u32 %s37, 1
        %s484 = scalar_lea.sflag [#allocation9], %s483
        %s485 = sand.u32 %s135, 1
        %s486 = scalar_lea.vmem [#allocation8], %s485
        // Predicated region
        $region65: #{tpu_custom_call.1} parent=51 // pred_check
          %p487 = pneg %p148
        $region66: #{tpu_custom_call.1} parent=51 // pred_check_branch
          %489 = sbr.rel (%p487) target = $region68
        $region67: #{tpu_custom_call.1} parent=51 // pred_region
          %490 = dma.done %s484, 16
        $region68: #{tpu_custom_call.1} parent=51 // pred_fallthru
          _
        %s491 = sand.u32 %s37, 1
        %s492 = scalar_lea.sflag [#allocation9], %s491
        %s493 = sand.u32 %s161, 1
        %s494 = smul.addr %s493, 32
        %s495 = scalar_lea.vmem [#allocation10], %s494
        // Predicated region
        $region69: #{tpu_custom_call.1} parent=51 // pred_check
          %p496 = pneg %p174
        $region70: #{tpu_custom_call.1} parent=51 // pred_check_branch
          %498 = sbr.rel (%p496) target = $region72
        $region71: #{tpu_custom_call.1} parent=51 // pred_region
          %499 = dma.done %s492, 512
        $region72: #{tpu_custom_call.1} parent=51 // pred_fallthru
          _
        %s500 = sand.u32 %s37, 1
        %s501 = scalar_lea.sflag [#allocation12], %s500
        %s502 = sand.u32 %s187, 1
        %s503 = scalar_lea.vmem [#allocation11], %s502
        // Predicated region
        $region73: #{tpu_custom_call.1} parent=51 // pred_check
          %p504 = pneg %p200
        $region74: #{tpu_custom_call.1} parent=51 // pred_check_branch
          %506 = sbr.rel (%p504) target = $region76
        $region75: #{tpu_custom_call.1} parent=51 // pred_region
          %507 = dma.done %s501, 16
        $region76: #{tpu_custom_call.1} parent=51 // pred_fallthru
          _
        %s508 = sand.u32 %s37, 1
        %s509 = scalar_lea.sflag [#allocation12], %s508
        %s510 = sand.u32 %s213, 1
        %s511 = smul.addr %s510, 32
        %s512 = scalar_lea.vmem [#allocation13], %s511
        // Predicated region
        $region77: #{tpu_custom_call.1} parent=51 // pred_check
          %p513 = pneg %p226
        $region78: #{tpu_custom_call.1} parent=51 // pred_check_branch
          %515 = sbr.rel (%p513) target = $region80
        $region79: #{tpu_custom_call.1} parent=51 // pred_region
          %516 = dma.done %s509, 512
        $region80: #{tpu_custom_call.1} parent=51 // pred_fallthru
          _
        %s517 = sand.u32 %s239, 1
        %s518 = scalar_lea.sflag [#allocation15], %s517
        %s519 = sand.u32 %s239, 1
        %s520 = scalar_lea.vmem [#allocation14], %s519
        // Predicated region
        $region81: #{tpu_custom_call.1} parent=51 // pred_check
          %p521 = pneg %p252
        $region82: #{tpu_custom_call.1} parent=51 // pred_check_branch
          %523 = sbr.rel (%p521) target = $region84
        $region83: #{tpu_custom_call.1} parent=51 // pred_region
          %524 = dma.done %s518, 16
        $region84: #{tpu_custom_call.1} parent=51 // pred_fallthru
          _
        %s525 = sand.u32 %s57, 1
        %s526 = scalar_lea.sflag [#allocation3], %s525
        %s527 = sand.u32 %s57, 1
        %s528 = smul.addr %s527, 8
        %s529 = scalar_lea.vmem [#allocation2], %s528
        %p530 = pneg %p70
        %p531 = pneg %p67
        %s532 = sand.u32 %s37, 1
        %s533 = scalar_lea.sflag [#allocation6], %s532
        %s534 = sand.u32 %s83, 1
        %s535 = smul.addr %s534, 8
        %s536 = scalar_lea.vmem [#allocation5], %s535
        %p537 = pneg %p96
        %p538 = pneg %p93
        %s539 = sand.u32 %s37, 1
        %s540 = scalar_lea.sflag [#allocation6], %s539
        %s541 = sand.u32 %s109, 1
        %s542 = smul.addr %s541, 32
        %s543 = scalar_lea.vmem [#allocation7], %s542
        %p544 = pneg %p122
        %p545 = pneg %p119
        %s546 = sand.u32 %s37, 1
        %s547 = scalar_lea.sflag [#allocation9], %s546
        %s548 = sand.u32 %s135, 1
        %s549 = scalar_lea.vmem [#allocation8], %s548
        %p550 = pneg %p148
        %p551 = pneg %p145
        %s552 = sand.u32 %s37, 1
        %s553 = scalar_lea.sflag [#allocation9], %s552
        %s554 = sand.u32 %s161, 1
        %s555 = smul.addr %s554, 32
        %s556 = scalar_lea.vmem [#allocation10], %s555
        %p557 = pneg %p174
        %p558 = pneg %p171
        %s559 = sand.u32 %s37, 1
        %s560 = scalar_lea.sflag [#allocation12], %s559
        %s561 = sand.u32 %s187, 1
        %s562 = scalar_lea.vmem [#allocation11], %s561
        %p563 = pneg %p200
        %p564 = pneg %p197
        %s565 = sand.u32 %s37, 1
        %s566 = scalar_lea.sflag [#allocation12], %s565
        %s567 = sand.u32 %s213, 1
        %s568 = smul.addr %s567, 32
        %s569 = scalar_lea.vmem [#allocation13], %s568
        %p570 = pneg %p226
        %p571 = pneg %p223
        %s572 = sand.u32 %s239, 1
        %s573 = scalar_lea.sflag [#allocation15], %s572
        %s574 = sand.u32 %s239, 1
        %s575 = scalar_lea.vmem [#allocation14], %s574
        %p576 = pneg %p252
        %p577 = pneg %p249
        %p578 = pneg %p280
        %p579 = pneg %p277
        %s580 = sand.u32 %s267, 1
        %s581 = scalar_lea.sflag [#allocation4], %s580
        %s582 = sand.u32 %s267, 1
        %s583 = smul.addr %s582, 8
        %s584 = scalar_lea.vmem [#allocation16], %s583
        %v585 = vld [vmem:[%s460] sm:$0xff]
        %v586 = vld [vmem:[%s478] sm:$0xff]
        %v587 = vld [vmem:[%s478 + $0x8] sm:$0xff]
        %v588 = vld [vmem:[%s478 + $0x10] sm:$0xff]
        %v589 = vld [vmem:[%s478 + $0x18] sm:$0xff]
        %v590 = vld [vmem:[%s486] sm:$0x1]
        %v592 = vlaneseq
        %v593 = vshrl.u32 %v592, 7
        %v594 = vsub.s32 0, %v593
        %v595 = vrot.slane %v590, %v594
        %vm597 = vcmask 261120
        %v599 = vsel %vm597, %v585, 0
        %601 = vmatprep.subr.mxu0 0.0
        %602 = vmatpush1.msra.mxu0 %v586
        %603 = vmatprep.subr.mxu0 0.0
        %604 = vmatpush1.msra.mxu0 %v587
        %605 = vmatprep.subr.mxu0 0.0
        %606 = vmatpush1.msra.mxu0 %v588
        %607 = vmatprep.subr.mxu0 0.0
        %608 = vmatpush1.msra.mxu0 %v589
        %609 = vmatprep.subr.mxu0 0.0
        %610 = vmatpush1.msra.mxu0 0.0
        %611 = vmatprep.subr.mxu0 0.0
        %612 = vmatpush1.msra.mxu0 0.0
        %613 = vmatprep.subr.mxu0 0.0
        %614 = vmatpush1.msra.mxu0 0.0
        %615 = vmatprep.subr.mxu0 0.0
        %616 = vmatpush1.msra.mxu0 0.0
        %617 = vmatprep.subr.mxu0 0.0
        %618 = vmatpush1.msra.mxu0 0.0
        %619 = vmatprep.subr.mxu0 0.0
        %620 = vmatpush1.msra.mxu0 0.0
        %621 = vmatprep.subr.mxu0 0.0
        %622 = vmatpush1.msra.mxu0 0.0
        %623 = vmatprep.subr.mxu0 0.0
        %624 = vmatpush1.msra.mxu0 0.0
        %625 = vmatprep.subr.mxu0 0.0
        %626 = vmatpush1.msra.mxu0 0.0
        %627 = vmatprep.subr.mxu0 0.0
        %628 = vmatpush1.msra.mxu0 0.0
        %629 = vmatprep.subr.mxu0 0.0
        %630 = vmatpush1.msra.mxu0 0.0
        %631 = vmatprep.subr.mxu0 0.0
        %632 = vmatpush1.msra.mxu0 0.0
        %633 = vmatprep.subr.mxu0 0.0
        %634 = vmatpush1.msra.mxu0 0.0
        %635 = vmatprep.subr.mxu0 0.0
        %636 = vmatpush1.msra.mxu0 0.0
        %637 = vmatprep.subr.mxu0 0.0
        %638 = vmatpush1.msra.mxu0 0.0
        %639 = vmatprep.subr.mxu0 0.0
        %640 = vmatpush1.msra.mxu0 0.0
        %641 = vmatprep.subr.mxu0 0.0
        %642 = vmatpush1.msra.mxu0 0.0
        %643 = vmatprep.subr.mxu0 0.0
        %644 = vmatpush1.msra.mxu0 0.0
        %645 = vmatprep.subr.mxu0 0.0
        %646 = vmatpush1.msra.mxu0 0.0
        %647 = vmatprep.subr.mxu0 0.0
        %648 = vmatpush1.msra.mxu0 0.0
        %649 = vmatprep.subr.mxu0 0.0
        %650 = vmatpush1.msra.mxu0 0.0
        %651 = vmatprep.subr.mxu0 0.0
        %652 = vmatpush1.msra.mxu0 0.0
        %653 = vmatprep.subr.mxu0 0.0
        %654 = vmatpush1.msra.mxu0 0.0
        %655 = vmatprep.subr.mxu0 0.0
        %656 = vmatpush1.msra.mxu0 0.0
        %657 = vmatprep.subr.mxu0 0.0
        %658 = vmatpush1.msra.mxu0 0.0
        %659 = vmatprep.subr.mxu0 0.0
        %660 = vmatpush1.msra.mxu0 0.0
        %661 = vmatprep.subr.mxu0 0.0
        %662 = vmatpush1.msra.mxu0 0.0
        %663 = vmatprep.subr.mxu0 0.0
        %664 = vmatpush1.msra.mxu0 0.0
        %665 = vmatprep.mubr.f32.mxu0 0.0
        %666 = vmatmul.mubr.f32.gmra.mrb[0].mxu0 %v599
        %v667 = vpop.f32.mrb[0].mxu0
        %v668 = vadd.f32 %v595, %v667
        %v669 = vpop.f32.mrb[0].mxu0
        %670 = vdwg.mxu0
        %v671 = vld [vmem:[%s495] sm:$0xff]
        %v672 = vld [vmem:[%s495 + $0x8] sm:$0xff]
        %v673 = vld [vmem:[%s495 + $0x10] sm:$0xff]
        %v674 = vld [vmem:[%s495 + $0x18] sm:$0xff]
        %v675 = vld [vmem:[%s503] sm:$0x1]
        %v677 = vlaneseq
        %v678 = vshrl.u32 %v677, 7
        %v679 = vsub.s32 0, %v678
        %v680 = vrot.slane %v675, %v679
        %682 = vmatprep.subr.mxu0 0.0
        %683 = vmatpush1.msra.mxu0 %v671
        %684 = vmatprep.subr.mxu0 0.0
        %685 = vmatpush1.msra.mxu0 %v672
        %686 = vmatprep.subr.mxu0 0.0
        %687 = vmatpush1.msra.mxu0 %v673
        %688 = vmatprep.subr.mxu0 0.0
        %689 = vmatpush1.msra.mxu0 %v674
        %690 = vmatprep.subr.mxu0 0.0
        %691 = vmatpush1.msra.mxu0 0.0
        %692 = vmatprep.subr.mxu0 0.0
        %693 = vmatpush1.msra.mxu0 0.0
        %694 = vmatprep.subr.mxu0 0.0
        %695 = vmatpush1.msra.mxu0 0.0
        %696 = vmatprep.subr.mxu0 0.0
        %697 = vmatpush1.msra.mxu0 0.0
        %698 = vmatprep.subr.mxu0 0.0
        %699 = vmatpush1.msra.mxu0 0.0
        %700 = vmatprep.subr.mxu0 0.0
        %701 = vmatpush1.msra.mxu0 0.0
        %702 = vmatprep.subr.mxu0 0.0
        %703 = vmatpush1.msra.mxu0 0.0
        %704 = vmatprep.subr.mxu0 0.0
        %705 = vmatpush1.msra.mxu0 0.0
        %706 = vmatprep.subr.mxu0 0.0
        %707 = vmatpush1.msra.mxu0 0.0
        %708 = vmatprep.subr.mxu0 0.0
        %709 = vmatpush1.msra.mxu0 0.0
        %710 = vmatprep.subr.mxu0 0.0
        %711 = vmatpush1.msra.mxu0 0.0
        %712 = vmatprep.subr.mxu0 0.0
        %713 = vmatpush1.msra.mxu0 0.0
        %714 = vmatprep.subr.mxu0 0.0
        %715 = vmatpush1.msra.mxu0 0.0
        %716 = vmatprep.subr.mxu0 0.0
        %717 = vmatpush1.msra.mxu0 0.0
        %718 = vmatprep.subr.mxu0 0.0
        %719 = vmatpush1.msra.mxu0 0.0
        %720 = vmatprep.subr.mxu0 0.0
        %721 = vmatpush1.msra.mxu0 0.0
        %722 = vmatprep.subr.mxu0 0.0
        %723 = vmatpush1.msra.mxu0 0.0
        %724 = vmatprep.subr.mxu0 0.0
        %725 = vmatpush1.msra.mxu0 0.0
        %726 = vmatprep.subr.mxu0 0.0
        %727 = vmatpush1.msra.mxu0 0.0
        %728 = vmatprep.subr.mxu0 0.0
        %729 = vmatpush1.msra.mxu0 0.0
        %730 = vmatprep.subr.mxu0 0.0
        %731 = vmatpush1.msra.mxu0 0.0
        %732 = vmatprep.subr.mxu0 0.0
        %733 = vmatpush1.msra.mxu0 0.0
        %734 = vmatprep.subr.mxu0 0.0
        %735 = vmatpush1.msra.mxu0 0.0
        %736 = vmatprep.subr.mxu0 0.0
        %737 = vmatpush1.msra.mxu0 0.0
        %738 = vmatprep.subr.mxu0 0.0
        %739 = vmatpush1.msra.mxu0 0.0
        %740 = vmatprep.subr.mxu0 0.0
        %741 = vmatpush1.msra.mxu0 0.0
        %742 = vmatprep.subr.mxu0 0.0
        %743 = vmatpush1.msra.mxu0 0.0
        %744 = vmatprep.subr.mxu0 0.0
        %745 = vmatpush1.msra.mxu0 0.0
        %746 = vmatprep.mubr.f32.mxu0 0.0
        %747 = vmatmul.mubr.f32.gmra.mrb[0].mxu0 %v599
        %v748 = vpop.f32.mrb[0].mxu0
        %v749 = vadd.f32 %v680, %v748
        %v750 = vpop.f32.mrb[0].mxu0
        %751 = vdwg.mxu0
        %v752 = vld [vmem:[%s512] sm:$0xff]
        %v753 = vld [vmem:[%s512 + $0x8] sm:$0xff]
        %v754 = vld [vmem:[%s512 + $0x10] sm:$0xff]
        %v755 = vld [vmem:[%s512 + $0x18] sm:$0xff]
        %v756 = vld [vmem:[%s520] sm:$0x1]
        %v758 = vlaneseq
        %v759 = vshrl.u32 %v758, 7
        %v760 = vsub.s32 0, %v759
        %v761 = vrot.slane %v756, %v760
        %763 = vmatprep.subr.mxu0 0.0
        %764 = vmatpush1.msra.mxu0 %v752
        %765 = vmatprep.subr.mxu0 0.0
        %766 = vmatpush1.msra.mxu0 %v753
        %767 = vmatprep.subr.mxu0 0.0
        %768 = vmatpush1.msra.mxu0 %v754
        %769 = vmatprep.subr.mxu0 0.0
        %770 = vmatpush1.msra.mxu0 %v755
        %771 = vmatprep.subr.mxu0 0.0
        %772 = vmatpush1.msra.mxu0 0.0
        %773 = vmatprep.subr.mxu0 0.0
        %774 = vmatpush1.msra.mxu0 0.0
        %775 = vmatprep.subr.mxu0 0.0
        %776 = vmatpush1.msra.mxu0 0.0
        %777 = vmatprep.subr.mxu0 0.0
        %778 = vmatpush1.msra.mxu0 0.0
        %779 = vmatprep.subr.mxu0 0.0
        %780 = vmatpush1.msra.mxu0 0.0
        %781 = vmatprep.subr.mxu0 0.0
        %782 = vmatpush1.msra.mxu0 0.0
        %783 = vmatprep.subr.mxu0 0.0
        %784 = vmatpush1.msra.mxu0 0.0
        %785 = vmatprep.subr.mxu0 0.0
        %786 = vmatpush1.msra.mxu0 0.0
        %787 = vmatprep.subr.mxu0 0.0
        %788 = vmatpush1.msra.mxu0 0.0
        %789 = vmatprep.subr.mxu0 0.0
        %790 = vmatpush1.msra.mxu0 0.0
        %791 = vmatprep.subr.mxu0 0.0
        %792 = vmatpush1.msra.mxu0 0.0
        %793 = vmatprep.subr.mxu0 0.0
        %794 = vmatpush1.msra.mxu0 0.0
        %795 = vmatprep.subr.mxu0 0.0
        %796 = vmatpush1.msra.mxu0 0.0
        %797 = vmatprep.subr.mxu0 0.0
        %798 = vmatpush1.msra.mxu0 0.0
        %799 = vmatprep.subr.mxu0 0.0
        %800 = vmatpush1.msra.mxu0 0.0
        %801 = vmatprep.subr.mxu0 0.0
        %802 = vmatpush1.msra.mxu0 0.0
        %803 = vmatprep.subr.mxu0 0.0
        %804 = vmatpush1.msra.mxu0 0.0
        %805 = vmatprep.subr.mxu0 0.0
        %806 = vmatpush1.msra.mxu0 0.0
        %807 = vmatprep.subr.mxu0 0.0
        %808 = vmatpush1.msra.mxu0 0.0
        %809 = vmatprep.subr.mxu0 0.0
        %810 = vmatpush1.msra.mxu0 0.0
        %811 = vmatprep.subr.mxu0 0.0
        %812 = vmatpush1.msra.mxu0 0.0
        %813 = vmatprep.subr.mxu0 0.0
        %814 = vmatpush1.msra.mxu0 0.0
        %815 = vmatprep.subr.mxu0 0.0
        %816 = vmatpush1.msra.mxu0 0.0
        %817 = vmatprep.subr.mxu0 0.0
        %818 = vmatpush1.msra.mxu0 0.0
        %819 = vmatprep.subr.mxu0 0.0
        %820 = vmatpush1.msra.mxu0 0.0
        %821 = vmatprep.subr.mxu0 0.0
        %822 = vmatpush1.msra.mxu0 0.0
        %823 = vmatprep.subr.mxu0 0.0
        %824 = vmatpush1.msra.mxu0 0.0
        %825 = vmatprep.subr.mxu0 0.0
        %826 = vmatpush1.msra.mxu0 0.0
        %827 = vmatprep.mubr.f32.mxu0 0.0
        %828 = vmatmul.mubr.f32.gmra.mrb[0].mxu0 %v599
        %v829 = vpop.f32.mrb[0].mxu0
        %v830 = vadd.f32 %v761, %v829
        %v831 = vpop.f32.mrb[0].mxu0
        %832 = vdwg.mxu0
        %vm833 = vcmask 64512
        %v835 = vsel %vm833, %v668, 0
        %v838 = vsel %vm833, %v749, 0
        %840 = vmatprep.subr.mxu0 0.0
        %841 = vmatpush1.xpose.msra.mxu0 %v838
        %842 = vmatprep.subr.mxu0 0.0
        %843 = vmatpush1.xpose.msra.mxu0 0.0
        %844 = vmatprep.subr.mxu0 0.0
        %845 = vmatpush1.xpose.msra.mxu0 0.0
        %846 = vmatprep.subr.mxu0 0.0
        %847 = vmatpush1.xpose.msra.mxu0 0.0
        %848 = vmatprep.subr.mxu0 0.0
        %849 = vmatpush1.xpose.msra.mxu0 0.0
        %850 = vmatprep.subr.mxu0 0.0
        %851 = vmatpush1.xpose.msra.mxu0 0.0
        %852 = vmatprep.subr.mxu0 0.0
        %853 = vmatpush1.xpose.msra.mxu0 0.0
        %854 = vmatprep.subr.mxu0 0.0
        %855 = vmatpush1.xpose.msra.mxu0 0.0
        %856 = vmatprep.subr.mxu0 0.0
        %857 = vmatpush1.xpose.msra.mxu0 0.0
        %858 = vmatprep.subr.mxu0 0.0
        %859 = vmatpush1.xpose.msra.mxu0 0.0
        %860 = vmatprep.subr.mxu0 0.0
        %861 = vmatpush1.xpose.msra.mxu0 0.0
        %862 = vmatprep.subr.mxu0 0.0
        %863 = vmatpush1.xpose.msra.mxu0 0.0
        %864 = vmatprep.subr.mxu0 0.0
        %865 = vmatpush1.xpose.msra.mxu0 0.0
        %866 = vmatprep.subr.mxu0 0.0
        %867 = vmatpush1.xpose.msra.mxu0 0.0
        %868 = vmatprep.subr.mxu0 0.0
        %869 = vmatpush1.xpose.msra.mxu0 0.0
        %870 = vmatprep.subr.mxu0 0.0
        %871 = vmatpush1.xpose.msra.mxu0 0.0
        %872 = vmatprep.subr.mxu0 0.0
        %873 = vmatpush1.xpose.msra.mxu0 0.0
        %874 = vmatprep.subr.mxu0 0.0
        %875 = vmatpush1.xpose.msra.mxu0 0.0
        %876 = vmatprep.subr.mxu0 0.0
        %877 = vmatpush1.xpose.msra.mxu0 0.0
        %878 = vmatprep.subr.mxu0 0.0
        %879 = vmatpush1.xpose.msra.mxu0 0.0
        %880 = vmatprep.subr.mxu0 0.0
        %881 = vmatpush1.xpose.msra.mxu0 0.0
        %882 = vmatprep.subr.mxu0 0.0
        %883 = vmatpush1.xpose.msra.mxu0 0.0
        %884 = vmatprep.subr.mxu0 0.0
        %885 = vmatpush1.xpose.msra.mxu0 0.0
        %886 = vmatprep.subr.mxu0 0.0
        %887 = vmatpush1.xpose.msra.mxu0 0.0
        %888 = vmatprep.subr.mxu0 0.0
        %889 = vmatpush1.xpose.msra.mxu0 0.0
        %890 = vmatprep.subr.mxu0 0.0
        %891 = vmatpush1.xpose.msra.mxu0 0.0
        %892 = vmatprep.subr.mxu0 0.0
        %893 = vmatpush1.xpose.msra.mxu0 0.0
        %894 = vmatprep.subr.mxu0 0.0
        %895 = vmatpush1.xpose.msra.mxu0 0.0
        %896 = vmatprep.subr.mxu0 0.0
        %897 = vmatpush1.xpose.msra.mxu0 0.0
        %898 = vmatprep.subr.mxu0 0.0
        %899 = vmatpush1.xpose.msra.mxu0 0.0
        %900 = vmatprep.subr.mxu0 0.0
        %901 = vmatpush1.xpose.msra.mxu0 0.0
        %902 = vmatprep.subr.mxu0 0.0
        %903 = vmatpush1.xpose.msra.mxu0 0.0
        %904 = vmatprep.mubr.f32.mxu0 0.0
        %905 = vmatmul.mubr.f32.gmra.mrb[0].mxu0 %v835
        %v906 = vpop.f32.mrb[0].mxu0
        %v907 = vadd.f32 0.0, %v906
        %v908 = vpop.f32.mrb[0].mxu0
        %909 = vdwg.mxu0
        %v910 = vmul.f32 %v907, 0.35355338
        %v911 = vld [vmem:[%s469] sm:$0xff]
        %v912 = vadd.f32 %v910, %v911
        %v913 = vsel %vm833, %v912, -inf
        %914 = vmax.xlane.f32.xlu0 %v913
        %v915 = vpop.xlane.xlu0 %914
        %v916 = vsub.f32 %v912, %v915
        %v917 = vmul.f32 %v916, 1.442695
        %v918 = vpow.pop %v917
        %v919 = vsel %vm833, %v918, 0.0
        %920 = vadd.xlane.f32.xlu0 %v919
        %v921 = vpop.xlane.xlu0 %920
        %v922 = vrcp.pop %v921
        %v923 = vmul.f32 %v918, %v922
        %v925 = vsel %vm833, %v923, 0
        %927 = vmatprep.subr.mxu0 0.0
        %928 = vmatpush1.msra.mxu0 %v830
        %929 = vmatprep.subr.mxu0 0.0
        %930 = vmatpush1.msra.mxu0 0.0
        %931 = vmatprep.subr.mxu0 0.0
        %932 = vmatpush1.msra.mxu0 0.0
        %933 = vmatprep.subr.mxu0 0.0
        %934 = vmatpush1.msra.mxu0 0.0
        %935 = vmatprep.subr.mxu0 0.0
        %936 = vmatpush1.msra.mxu0 0.0
        %937 = vmatprep.subr.mxu0 0.0
        %938 = vmatpush1.msra.mxu0 0.0
        %939 = vmatprep.subr.mxu0 0.0
        %940 = vmatpush1.msra.mxu0 0.0
        %941 = vmatprep.subr.mxu0 0.0
        %942 = vmatpush1.msra.mxu0 0.0
        %943 = vmatprep.subr.mxu0 0.0
        %944 = vmatpush1.msra.mxu0 0.0
        %945 = vmatprep.subr.mxu0 0.0
        %946 = vmatpush1.msra.mxu0 0.0
        %947 = vmatprep.subr.mxu0 0.0
        %948 = vmatpush1.msra.mxu0 0.0
        %949 = vmatprep.subr.mxu0 0.0
        %950 = vmatpush1.msra.mxu0 0.0
        %951 = vmatprep.subr.mxu0 0.0
        %952 = vmatpush1.msra.mxu0 0.0
        %953 = vmatprep.subr.mxu0 0.0
        %954 = vmatpush1.msra.mxu0 0.0
        %955 = vmatprep.subr.mxu0 0.0
        %956 = vmatpush1.msra.mxu0 0.0
        %957 = vmatprep.subr.mxu0 0.0
        %958 = vmatpush1.msra.mxu0 0.0
        %959 = vmatprep.subr.mxu0 0.0
        %960 = vmatpush1.msra.mxu0 0.0
        %961 = vmatprep.subr.mxu0 0.0
        %962 = vmatpush1.msra.mxu0 0.0
        %963 = vmatprep.subr.mxu0 0.0
        %964 = vmatpush1.msra.mxu0 0.0
        %965 = vmatprep.subr.mxu0 0.0
        %966 = vmatpush1.msra.mxu0 0.0
        %967 = vmatprep.subr.mxu0 0.0
        %968 = vmatpush1.msra.mxu0 0.0
        %969 = vmatprep.subr.mxu0 0.0
        %970 = vmatpush1.msra.mxu0 0.0
        %971 = vmatprep.subr.mxu0 0.0
        %972 = vmatpush1.msra.mxu0 0.0
        %973 = vmatprep.subr.mxu0 0.0
        %974 = vmatpush1.msra.mxu0 0.0
        %975 = vmatprep.subr.mxu0 0.0
        %976 = vmatpush1.msra.mxu0 0.0
        %977 = vmatprep.subr.mxu0 0.0
        %978 = vmatpush1.msra.mxu0 0.0
        %979 = vmatprep.subr.mxu0 0.0
        %980 = vmatpush1.msra.mxu0 0.0
        %981 = vmatprep.subr.mxu0 0.0
        %982 = vmatpush1.msra.mxu0 0.0
        %983 = vmatprep.subr.mxu0 0.0
        %984 = vmatpush1.msra.mxu0 0.0
        %985 = vmatprep.subr.mxu0 0.0
        %986 = vmatpush1.msra.mxu0 0.0
        %987 = vmatprep.subr.mxu0 0.0
        %988 = vmatpush1.msra.mxu0 0.0
        %989 = vmatprep.subr.mxu0 0.0
        %990 = vmatpush1.msra.mxu0 0.0
        %991 = vmatprep.mubr.f32.mxu0 0.0
        %992 = vmatmul.mubr.f32.gmra.mrb[0].mxu0 %v925
        %v993 = vpop.f32.mrb[0].mxu0
        %v994 = vadd.f32 0.0, %v993
        %v995 = vpop.f32.mrb[0].mxu0
        %996 = vdwg.mxu0
        %997 = vst.msk [vmem:[%s584] sm:$0xff] %vm833, %v994
        %s998 = sand.u32 %s267, 1
        %s999 = scalar_lea.sflag [#allocation4], %s998
        %s1000 = sand.u32 %s267, 1
        %s1001 = smul.addr %s1000, 8
        %s1002 = scalar_lea.vmem [#allocation16], %s1001
        // Predicated region
        $region85: #{tpu_custom_call.1} parent=51 // pred_check
          %p1003 = pneg %p277
        $region86: #{tpu_custom_call.1} parent=51 // pred_check_branch
          %1005 = sbr.rel (%p1003) target = $region88
        $region87: #{tpu_custom_call.1} parent=51 // pred_region
          %s1007 = ssub.s32 128, 128
          %1008 = vsyncadd %s999, %s1007
          %s1009 = smul.addr %s41, 4
          %s1010 = sadd.s32 %s42, %s1009
          %s1011 = smul.addr %s1010, 128
          %s1012 = scalar_lea.hbm %s8, %s1011
          %s1014 = sshll.u32 %s1002, 4
          %s1015 = int_to_ptr.vmem [resolvable:$true] %s1014
          %1017 = dma.vmem_to_hbm [thread:$0]  %s1015, 128, %s1012, %s999
        $region88: #{tpu_custom_call.1} parent=51 // pred_fallthru
          _
      $region52: #{tpu_custom_call.1} parent=5 // pred_fallthru
        _
      %p1018 = scmp.le.s32.totalorder 2, %s32
      // Predicated region
      $region89: #{tpu_custom_call.1} parent=5 // pred_check
        %p1019 = pneg %p1018
      $region90: #{tpu_custom_call.1} parent=5 // pred_check_branch
        %1021 = sbr.rel (%p1019) target = $region92
      $region91: #{tpu_custom_call.1} parent=5 // pred_region
        %s1022 = ssub.s32 %s32, 2
        // Predicated region
        $region93: #{tpu_custom_call.1} parent=91 // pred_check
          %p1023 = pneg %p283
        $region94: #{tpu_custom_call.1} parent=91 // pred_check_branch
          %1025 = sbr.rel (%p1023) target = $region96
        $region95: #{tpu_custom_call.1} parent=91 // pred_region
          %s1026 = sand.u32 %s268, 1
          %s1027 = scalar_lea.sflag [#allocation4], %s1026
          %s1028 = sand.u32 %s268, 1
          %s1029 = smul.addr %s1028, 8
          %s1030 = scalar_lea.vmem [#allocation16], %s1029
          %1031 = dma.done %s1027, 128
        $region96: #{tpu_custom_call.1} parent=91 // pred_fallthru
          _
      $region92: #{tpu_custom_call.1} parent=5 // pred_fallthru
        _
    $region6: #{tpu_custom_call.1} parent=1 // loop_footer
      %s36 = sadd.s32 1, %s32
    $region7: #{tpu_custom_call.1} parent=1 // loop_footer_branch
      %31 = sbr.rel target = $region3
    $region8: #{tpu_custom_call.1} parent=1 // loop_exit
      _
    %1032 = vsyncpa [#allocation3], 1
    %s1033 = scalar_lea.sflag [#allocation3], 1
    %1034 = vsyncpa %s1033, 1
    %1035 = vsyncpa [#allocation6], 1
    %s1036 = scalar_lea.sflag [#allocation6], 1
    %1037 = vsyncpa %s1036, 1
    %1038 = vsyncpa [#allocation9], 1
    %s1039 = scalar_lea.sflag [#allocation9], 1
    %1040 = vsyncpa %s1039, 1
    %1041 = vsyncpa [#allocation12], 1
    %s1042 = scalar_lea.sflag [#allocation12], 1
    %1043 = vsyncpa %s1042, 1
    %1044 = vsyncpa [#allocation15], 1
    %s1045 = scalar_lea.sflag [#allocation15], 1
    %1046 = vsyncpa %s1045, 1
    %1047 = vsyncpa [#allocation4], 1
    %s1048 = scalar_lea.sflag [#allocation4], 1
    %1049 = vsyncpa %s1048, 1

</llo_original>
